<compile_context>
chip_gen: v6e
topology: v6e:2x2x1
jax: 0.10.0
libtpu: 0.0.40
codegen_flags: <defaults>
</compile_context>

<pallas_src>
import functools

import jax
import jax.numpy as jnp
from jax.experimental import pallas as pl
from jax.experimental.pallas import tpu as pltpu

_LANE = 128
_SUBLANE = 8


def _round_up(x, m):
    return (x + m - 1) // m * m


def _supports_bf16_act():
    """bf16 VPU/EUP exists on v6e (Trillium) and v7x; v5e and older are f32-only."""
    try:
        kind = jax.devices()[0].device_kind.lower()
    except Exception:
        return False
    return any(tag in kind for tag in ("v6", "trillium", "v7", "tpu7", "7x", "ironwood"))


def _make_kernel(act_dtype):
    def kernel(s_ref, w1_ref, w2_ref, w3_ref, b_ref, out_ref):
        h2 = w2_ref.shape[1]       # fused hidden width (2 * 64 = 128)
        outw = w3_ref.shape[1]     # padded output width (multiple of 128)

        s = s_ref[...]
        b = b_ref[...]             # (3, 128) f32, rows = per-layer fused biases

        w1 = w1_ref[...]
        x = jnp.dot(s.astype(w1.dtype), w1, preferred_element_type=jnp.float32)
        x = jnp.tanh((x + b[0:1, :h2]).astype(act_dtype))

        w2 = w2_ref[...]
        x = jnp.dot(x.astype(w2.dtype), w2, preferred_element_type=jnp.float32)
        x = jnp.tanh((x + b[1:2, :h2]).astype(act_dtype))

        w3 = w3_ref[...]
        y = jnp.dot(x.astype(w3.dtype), w3, preferred_element_type=jnp.float32)
        out_ref[...] = (y + b[2:3, :outw]).astype(out_ref.dtype)

    return kernel


def pack_actor_critic_params(params, *, weight_dtype=jnp.bfloat16):
    """Fuse actor/critic weights into 3 lane-dense (128-wide) matmul operands."""
    num_inputs, hidden = params["wa1"].shape
    num_outputs = params["wa3"].shape[1]
    h2 = 2 * hidden
    out_dim = num_outputs + 1                    # logits + value
    out_pad = _round_up(out_dim, _LANE)
    bw = max(h2, out_pad)

    w1 = jnp.concatenate([params["wa1"], params["wc1"]], axis=1)          # (in, 2H)

    w2 = jnp.zeros((h2, h2), jnp.float32)
    w2 = w2.at[:hidden, :hidden].set(params["wa2"])
    w2 = w2.at[hidden:, hidden:].set(params["wc2"])                        # blockdiag

    w3 = jnp.zeros((h2, out_pad), jnp.float32)
    w3 = w3.at[:hidden, :num_outputs].set(params["wa3"])
    w3 = w3.at[hidden:, num_outputs:out_dim].set(params["wc3"])            # blockdiag + pad

    b = jnp.zeros((3, bw), jnp.float32)
    b = b.at[0, :hidden].set(params["ba1"][0]).at[0, hidden:h2].set(params["bc1"][0])
    b = b.at[1, :hidden].set(params["ba2"][0]).at[1, hidden:h2].set(params["bc2"][0])
    b = b.at[2, :num_outputs].set(params["ba3"][0]).at[2, num_outputs:out_dim].set(params["bc3"][0])

    return {
        "w1": w1.astype(weight_dtype),
        "w2": w2.astype(weight_dtype),
        "w3": w3.astype(weight_dtype),
        "b": b,                      # biases stay f32 (added onto the f32 MXU acc)
        "num_outputs": num_outputs,
    }


def _choose_tb(B, block_b, in_row_bytes, out_row_bytes, vmem_budget_bytes=12 << 20):
    """Pick the batch tile: as big as the VMEM budget allows, multiple of 8,
    and split into >=2 tiles when the whole batch would fit one tile (v7x megacore)."""
    # Per-row footprint: double-buffered state + output tiles plus ~3 f32 (row,128)
    # activation intermediates. 12 MiB budget keeps us under v5e's 16 MiB scoped
    # default, so no vmem_limit_bytes override is needed on any generation.
    per_row = 2 * (in_row_bytes + out_row_bytes) + 3 * _LANE * 4
    tb_cap = max(_SUBLANE, (vmem_budget_bytes // per_row) // _SUBLANE * _SUBLANE)
    tb = min(block_b, tb_cap, _round_up(B, _SUBLANE))
    tb = max(_SUBLANE, tb // _SUBLANE * _SUBLANE)
    if tb >= B and B >= 2 * _SUBLANE:
        # One tile would leave a v7x TensorCore idle; split the batch in two.
        tb = _round_up((B + 1) // 2, _SUBLANE)
    return tb


def actor_critic_forward_slab(states, packed, *, block_b=4096, act_dtype=None,
                              out_dtype=None):
    """states: [B, num_inputs] f32. Returns the fused [B, out_pad] output slab
    (logits in columns [:num_outputs], value in column num_outputs)."""
    B, num_inputs = states.shape
    w1, w2, w3, b = packed["w1"], packed["w2"], packed["w3"], packed["b"]
    h2 = w2.shape[1]
    out_pad = w3.shape[1]

    weights_bf16 = w1.dtype == jnp.bfloat16
    if act_dtype is None:
        # bf16 tanh only where the VPU/EUP supports it (v6e/v7x); f32 on v5e.
        act_dtype = jnp.bfloat16 if (weights_bf16 and _supports_bf16_act()) else jnp.float32
    if out_dtype is None:
        out_dtype = jnp.bfloat16 if weights_bf16 else jnp.float32

    tb = _choose_tb(B, block_b,
                    num_inputs * states.dtype.itemsize,
                    out_pad * jnp.dtype(out_dtype).itemsize)
    n_tiles = -(-B // tb)          # partial last block is masked by Pallas (no jnp.pad)
    n_rows = n_tiles * tb

    flops = 2 * n_rows * (num_inputs * h2 + h2 * h2 + h2 * out_pad)
    transcendentals = 2 * n_rows * h2
    bytes_accessed = (
        B * num_inputs * states.dtype.itemsize
        + B * out_pad * jnp.dtype(out_dtype).itemsize
        + w1.size * w1.dtype.itemsize
        + w2.size * w2.dtype.itemsize
        + w3.size * w3.dtype.itemsize
        + b.size * 4
    )

    # Note: the resident weight/bias operands (constant index_map) could be marked
    # pipeline_mode=pl.Buffered(1) to drop their second buffer; at ~100 KB total the
    # saving is negligible, so it is left at the default for maximum portability.
    out = pl.pallas_call(
        _make_kernel(act_dtype),
        out_shape=jax.ShapeDtypeStruct((B, out_pad), out_dtype),
        grid_spec=pltpu.PrefetchScalarGridSpec(
            num_scalar_prefetch=0,
            grid=(n_tiles,),
            in_specs=[
                pl.BlockSpec((tb, num_inputs), lambda i: (i, 0)),   # state tile (pipelined)
                pl.BlockSpec(w1.shape, lambda i: (0, 0)),           # weights stay resident
                pl.BlockSpec(w2.shape, lambda i: (0, 0)),
                pl.BlockSpec(w3.shape, lambda i: (0, 0)),
                pl.BlockSpec(b.shape, lambda i: (0, 0)),
            ],
            out_specs=pl.BlockSpec((tb, out_pad), lambda i: (i, 0)),  # lane-dense output
        ),
        compiler_params=pltpu.CompilerParams(
            dimension_semantics=("parallel",),   # shards batch tiles across v7x's 2 TCs
        ),
        cost_estimate=pl.CostEstimate(
            flops=flops, transcendentals=transcendentals, bytes_accessed=bytes_accessed
        ),
    )(states, w1, w2, w3, b)
    return out


def actor_critic_forward(states, packed, **kwargs):
    """Returns (logits [B, num_outputs], value [B, 1]).

    Call this under the consumer's jit so the slab slices fuse with downstream ops
    instead of costing an extra HBM read/write of the [B, 128] slab."""
    out = actor_critic_forward_slab(states, packed, **kwargs)
    n = packed["num_outputs"]
    return out[:, :n], out[:, n:n + 1]


def _orthogonal(key, in_dim, out_dim, gain):
    # PyTorch orthogonal_ acts on the (out, in) weight; we store (in, out) = W^T.
    # For rectangular layers this flips which side is orthonormal, so "matches
    # PyTorch init" is approximate; forward math is unaffected.
    init = jax.nn.initializers.orthogonal(scale=gain)
    return init(key, (in_dim, out_dim), jnp.float32)


def init_actor_critic_params(key, num_inputs, num_outputs, hidden=64):
    keys = jax.random.split(key, 6)
    zeros = lambda n: jnp.zeros((1, n), jnp.float32)
    return {
        # actor
        "wa1": _orthogonal(keys[0], num_inputs, hidden, 1.0), "ba1": zeros(hidden),
        "wa2": _orthogonal(keys[1], hidden, hidden, 1.0),     "ba2": zeros(hidden),
        "wa3": _orthogonal(keys[2], hidden, num_outputs, 0.01), "ba3": zeros(num_outputs),
        # critic
        "wc1": _orthogonal(keys[3], num_inputs, hidden, 1.0), "bc1": zeros(hidden),
        "wc2": _orthogonal(keys[4], hidden, hidden, 1.0),     "bc2": zeros(hidden),
        "wc3": _orthogonal(keys[5], hidden, 1, 1.0),          "bc3": zeros(1),
    }


def _reference_forward(states, p):
    xa = jnp.tanh(states @ p["wa1"] + p["ba1"])
    xa = jnp.tanh(xa @ p["wa2"] + p["ba2"])
    logits = xa @ p["wa3"] + p["ba3"]
    xc = jnp.tanh(states @ p["wc1"] + p["bc1"])
    xc = jnp.tanh(xc @ p["wc2"] + p["bc2"])
    value = xc @ p["wc3"] + p["bc3"]
    return logits, value


if __name__ == "__main__":
    B, NUM_INPUTS, NUM_OUTPUTS = 20, 32, 8

    key = jax.random.PRNGKey(0)
    k_states, k_params = jax.random.split(key)

    states = jax.random.normal(k_states, (B, NUM_INPUTS), jnp.float32)
    params = init_actor_critic_params(k_params, NUM_INPUTS, NUM_OUTPUTS)
    ref_logits, ref_value = _reference_forward(states, params)

    # --- f32 path (tight tolerance). Default tile choice -> 2 tiles (16 + partial 4),
    #     exercising the multi-tile index_map, partial-block masking, and the v7x split.
    packed_f32 = pack_actor_critic_params(params, weight_dtype=jnp.float32)
    fwd_f32 = jax.jit(functools.partial(actor_critic_forward, packed=packed_f32))
    logits, value = fwd_f32(states)
    jax.block_until_ready((logits, value))
    assert logits.shape == (B, NUM_OUTPUTS)
    assert value.shape == (B, 1)
    assert jnp.allclose(logits, ref_logits, atol=1e-4, rtol=1e-4)
    assert jnp.allclose(value, ref_value, atol=1e-4, rtol=1e-4)

    # --- f32 path, tiny tile (block_b=8 -> 3 tiles, last one partial).
    fwd_small = jax.jit(lambda s: actor_critic_forward(s, packed_f32, block_b=8))
    logits2, value2 = fwd_small(states)
    jax.block_until_ready((logits2, value2))
    assert jnp.allclose(logits2, ref_logits, atol=1e-4, rtol=1e-4)
    assert jnp.allclose(value2, ref_value, atol=1e-4, rtol=1e-4)

    # --- bf16 production path: bf16 weights + bf16 output; tanh in bf16 on v6e/v7x,
    #     f32 on v5e (generation-gated). Looser tolerance validates this config.
    packed_bf16 = pack_actor_critic_params(params)   # weight_dtype defaults to bf16
    fwd_bf16 = jax.jit(functools.partial(actor_critic_forward, packed=packed_bf16))
    logits3, value3 = fwd_bf16(states)
    jax.block_until_ready((logits3, value3))
    assert jnp.allclose(logits3.astype(jnp.float32), ref_logits, atol=5e-2, rtol=5e-2)
    assert jnp.allclose(value3.astype(jnp.float32), ref_value, atol=5e-2, rtol=5e-2)

    # TODO(synk): select_action / get_logproba (Categorical sampling & log_prob) are
    # post-forward sampling utilities, not part of the module's forward pass; left in JAX.
    print("KERNEL_OK")
</pallas_src>

<mosaic_0001>
module attributes {stable_mosaic.version = 11 : i64} {
  func.func @kernel(%arg0: i32, %arg1: memref<16x32xf32, #tpu.memory_space<vmem>>, %arg2: memref<32x128xf32, #tpu.memory_space<vmem>>, %arg3: memref<128x128xf32, #tpu.memory_space<vmem>>, %arg4: memref<128x128xf32, #tpu.memory_space<vmem>>, %arg5: memref<3x128xf32, #tpu.memory_space<vmem>>, %arg6: memref<16x128xf32, #tpu.memory_space<vmem>>) attributes {dimension_semantics = [#tpu.dimension_semantics<parallel>], iteration_bounds = array<i64: 2>, scalar_prefetch = 0 : i64, scratch_operands = 0 : i64, tpu.core_type = #tpu.core_type<tc>, window_params = [{transform_indices = @transform_0, window_bounds = array<i64: 16, 32>}, {pipeline_mode = #tpu.pipeline_mode<synchronous>, transform_indices = @transform_1, window_bounds = array<i64: 32, 128>}, {pipeline_mode = #tpu.pipeline_mode<synchronous>, transform_indices = @transform_2, window_bounds = array<i64: 128, 128>}, {pipeline_mode = #tpu.pipeline_mode<synchronous>, transform_indices = @transform_3, window_bounds = array<i64: 128, 128>}, {pipeline_mode = #tpu.pipeline_mode<synchronous>, transform_indices = @transform_4, window_bounds = array<i64: 3, 128>}, {transform_indices = @transform_5, window_bounds = array<i64: 16, 128>}]} {
    %c0 = arith.constant 0 : index
    %c0_0 = arith.constant 0 : index
    %0 = vector.load %arg1[%c0, %c0_0] : memref<16x32xf32, #tpu.memory_space<vmem>>, vector<16x32xf32>
    %c0_1 = arith.constant 0 : index
    %c0_2 = arith.constant 0 : index
    %1 = vector.load %arg5[%c0_1, %c0_2] : memref<3x128xf32, #tpu.memory_space<vmem>>, vector<3x128xf32>
    %c0_3 = arith.constant 0 : index
    %c0_4 = arith.constant 0 : index
    %2 = vector.load %arg2[%c0_3, %c0_4] : memref<32x128xf32, #tpu.memory_space<vmem>>, vector<32x128xf32>
    %cst = arith.constant dense<0.000000e+00> : vector<16x128xf32>
    %3 = tpu.matmul %0, %2, %cst {dimension_numbers = #tpu.dot_dimension_numbers<[1], [0], [0], [1], [0, 0, 1, 1], [], []>} : vector<16x32xf32>, vector<32x128xf32>, vector<16x128xf32> -> vector<16x128xf32>
    %4 = vector.extract_strided_slice %1 {offsets = [0, 0], sizes = [1, 128], strides = [1, 1]} : vector<3x128xf32> to vector<1x128xf32>
    %5 = vector.broadcast %4 : vector<1x128xf32> to vector<16x128xf32>
    %6 = arith.addf %3, %5 : vector<16x128xf32>
    %7 = math.tanh %6 : vector<16x128xf32>
    %c0_5 = arith.constant 0 : index
    %c0_6 = arith.constant 0 : index
    %8 = vector.load %arg3[%c0_5, %c0_6] : memref<128x128xf32, #tpu.memory_space<vmem>>, vector<128x128xf32>
    %cst_7 = arith.constant dense<0.000000e+00> : vector<16x128xf32>
    %9 = tpu.matmul %7, %8, %cst_7 {dimension_numbers = #tpu.dot_dimension_numbers<[1], [0], [0], [1], [0, 0, 1, 1], [], []>} : vector<16x128xf32>, vector<128x128xf32>, vector<16x128xf32> -> vector<16x128xf32>
    %10 = vector.extract_strided_slice %1 {offsets = [1, 0], sizes = [1, 128], strides = [1, 1]} : vector<3x128xf32> to vector<1x128xf32>
    %11 = vector.broadcast %10 : vector<1x128xf32> to vector<16x128xf32>
    %12 = arith.addf %9, %11 : vector<16x128xf32>
    %13 = math.tanh %12 : vector<16x128xf32>
    %c0_8 = arith.constant 0 : index
    %c0_9 = arith.constant 0 : index
    %14 = vector.load %arg4[%c0_8, %c0_9] : memref<128x128xf32, #tpu.memory_space<vmem>>, vector<128x128xf32>
    %cst_10 = arith.constant dense<0.000000e+00> : vector<16x128xf32>
    %15 = tpu.matmul %13, %14, %cst_10 {dimension_numbers = #tpu.dot_dimension_numbers<[1], [0], [0], [1], [0, 0, 1, 1], [], []>} : vector<16x128xf32>, vector<128x128xf32>, vector<16x128xf32> -> vector<16x128xf32>
    %16 = vector.extract_strided_slice %1 {offsets = [2, 0], sizes = [1, 128], strides = [1, 1]} : vector<3x128xf32> to vector<1x128xf32>
    %17 = vector.broadcast %16 : vector<1x128xf32> to vector<16x128xf32>
    %18 = arith.addf %15, %17 : vector<16x128xf32>
    %c0_11 = arith.constant 0 : index
    %c0_12 = arith.constant 0 : index
    %19 = vector.load %arg6[%c0_11, %c0_12] : memref<16x128xf32, #tpu.memory_space<vmem>>, vector<16x128xf32>
    tpu.vector_store %arg6[%c0_11, %c0_12], %18 {strides = array<i32>} : memref<16x128xf32, #tpu.memory_space<vmem>>, vector<16x128xf32>,
    return
  }
  func.func @transform_0(%arg0: i32) -> (i32, i32) {
    %c0_i32 = arith.constant 0 : i32
    %c0_i32_0 = arith.constant 0 : i32
    return %arg0, %c0_i32 : i32, i32
  }
  func.func @transform_1(%arg0: i32) -> (i32, i32) {
    %c0_i32 = arith.constant 0 : i32
    %c0_i32_0 = arith.constant 0 : i32
    %c0_i32_1 = arith.constant 0 : i32
    return %c0_i32, %c0_i32_0 : i32, i32
  }
  func.func @transform_2(%arg0: i32) -> (i32, i32) {
    %c0_i32 = arith.constant 0 : i32
    %c0_i32_0 = arith.constant 0 : i32
    %c0_i32_1 = arith.constant 0 : i32
    return %c0_i32, %c0_i32_0 : i32, i32
  }
  func.func @transform_3(%arg0: i32) -> (i32, i32) {
    %c0_i32 = arith.constant 0 : i32
    %c0_i32_0 = arith.constant 0 : i32
    %c0_i32_1 = arith.constant 0 : i32
    return %c0_i32, %c0_i32_0 : i32, i32
  }
  func.func @transform_4(%arg0: i32) -> (i32, i32) {
    %c0_i32 = arith.constant 0 : i32
    %c0_i32_0 = arith.constant 0 : i32
    %c0_i32_1 = arith.constant 0 : i32
    return %c0_i32, %c0_i32_0 : i32, i32
  }
  func.func @transform_5(%arg0: i32) -> (i32, i32) {
    %c0_i32 = arith.constant 0 : i32
    %c0_i32_0 = arith.constant 0 : i32
    return %arg0, %c0_i32 : i32, i32
  }
}

</mosaic_0001>

<llo_original>
// kernel: actor_critic_forward.1
$region0: #{actor_critic_forward.1}
  #allocation0 [shape = 'u32[]', space=smem, size = 0x4, offset = 0x4, fixed_abs, tag = 'smem constant byte address 0x4 - core index']
  #allocation1 [shape = 'u32[144,128]{1,0:T(1,128)}', space=vmem, size = 0x12000, scoped, tag = 'internal scratch']
  %s0 = inlined_call_operand.hbm [shape: f32[20,32], index: 0, kind: input, shape index: {}]
  %s1 = inlined_call_operand.hbm [shape: f32[32,128], index: 1, kind: input, shape index: {}]
  %s2 = inlined_call_operand.hbm [shape: f32[128,128], index: 2, kind: input, shape index: {}]
  %s3 = inlined_call_operand.hbm [shape: f32[128,128], index: 3, kind: input, shape index: {}]
  %s4 = inlined_call_operand.vmem [shape: f32[3,128], index: 4, kind: input, shape index: {}]
  %s5 = inlined_call_operand.vmem [shape: f32[20,128], index: 5, kind: output, shape index: {}]
  %s6 = sld [smem:[#allocation0]]
  $region117: #{actor_critic_forward.1} parent=0
    _
  %s8 = ssub.s32 1, %s6
  %s9 = scalar_select 0, %s8, %s6
  $region1: #{actor_critic_forward.1} parent=0
    #allocation2 [shape = 'u8[16384]{0}', space=vmem, size = 0x4000, scoped, tag = 'input window, operand 0']
    #allocation3 [shape = 's32[2]{0}', space=sflag, size = 0x8, scoped, tag = 'scoped memory for actor_critic_forward.1']
    #allocation4 [shape = 'u8[16384]{0}', space=vmem, size = 0x4000, scoped, tag = 'input window, operand 1, single buffered']
    #allocation5 [shape = 's32[1]{0}', space=sflag, size = 0x4, scoped, tag = 'scoped memory for actor_critic_forward.1']
    #allocation6 [shape = 'u8[65536]{0}', space=vmem, size = 0x10000, scoped, tag = 'input window, operand 2, single buffered']
    #allocation7 [shape = 'u8[65536]{0}', space=vmem, size = 0x10000, scoped, tag = 'input window, operand 3, single buffered']
    #allocation8 [shape = 's32[1]{0}', space=sflag, size = 0x4, scoped, tag = 'scoped memory for actor_critic_forward.1']
    #allocation9 [shape = 'u8[16384]{0}', space=vmem, size = 0x4000, scoped, tag = 'output window, operand 0']
    %10 = vsyncpa [#allocation3], 0
    %s11 = scalar_lea.sflag [#allocation3], 1
    %12 = vsyncpa %s11, 0
    %13 = vsyncpa [#allocation5], 0
    %14 = vsyncpa [#allocation8], 0
    loop: start=0, step=1, limit=4
    $region2: #{actor_critic_forward.1} parent=1 // loop_pre_header
      _
    $region3: #{actor_critic_forward.1} parent=1 // loop_header
      %s16 = sphi 0, %s20
      %p17 = scmp.ge.s32.totalorder %s16, 4
      %s26 = sphi 0, %s28
      %s29 = sphi 0, %s26
      %s30 = sphi 0, %s29
      %s46 = sphi 0, %s30
      %s50 = sphi 0, %s50
      %s52 = sphi 0, %s50
      %s53 = sphi 0, %s52
      %s67 = sphi 0, %s53
      %s71 = sphi 0, %s71
      %s73 = sphi 0, %s71
      %s74 = sphi 0, %s73
      %s88 = sphi 0, %s74
      %s92 = sphi 0, %s92
      %s94 = sphi 0, %s92
      %s95 = sphi 0, %s94
      %s109 = sphi 0, %s95
      %s113 = sphi 0, %s113
      %s115 = sphi 0, %s113
      %s116 = sphi 0, %s115
      %s130 = sphi 0, %s116
      %s136 = sphi 0, %s138
      %s139 = sphi 0, %s136
      %s140 = sphi 0, %s139
      %s156 = sphi 0, %s140
    $region4: #{actor_critic_forward.1} parent=1 // loop_header_branch
      %19 = sbr.rel (%p17) target = $region8
    $region5: #{actor_critic_forward.1} parent=1 // loop_body
      %s21 = ssub.s32 %s16, 1
      %s22 = ssub.s32 %s16, 2
      %s23 = sadd.s32 %s16, 1
      %s24 = ssub.s32 %s16, %s23
      %p25 = scmp.eq.s32.totalorder %s24, 0
      %s27 = sadd.s32 %s26, 1
      %s28 = scalar_select %p25, %s26, %s27
      %p31 = pneg %p25
      %p32 = scmp.eq.s32.totalorder %s16, 1
      %p33 = por %p31, %p32
      %p34 = scmp.ne.s32.totalorder %s26, %s29
      %p35 = scmp.eq.s32.totalorder %s16, 0
      %p36 = por %p34, %p35
      %p37 = scmp.ne.s32.totalorder %s26, %s29
      %p38 = scmp.eq.s32.totalorder %s21, 1
      %p39 = por %p37, %p38
      %p40 = scmp.ne.s32.totalorder %s29, %s30
      %p41 = scmp.eq.s32.totalorder %s21, 0
      %p42 = por %p40, %p41
      %p43 = scmp.ne.s32.totalorder %s29, %s30
      %p44 = scmp.eq.s32.totalorder %s22, 1
      %p45 = por %p43, %p44
      %p47 = scmp.ne.s32.totalorder %s30, %s46
      %p48 = scmp.eq.s32.totalorder %s22, 0
      %p49 = por %p47, %p48
      %s51 = sadd.s32 %s50, 1
      %p54 = scmp.eq.s32.totalorder %s16, 1
      %p55 = scmp.ne.s32.totalorder %s50, %s52
      %p56 = scmp.eq.s32.totalorder %s16, 0
      %p57 = por %p55, %p56
      %p58 = scmp.ne.s32.totalorder %s50, %s52
      %p59 = scmp.eq.s32.totalorder %s21, 1
      %p60 = por %p58, %p59
      %p61 = scmp.ne.s32.totalorder %s52, %s53
      %p62 = scmp.eq.s32.totalorder %s21, 0
      %p63 = por %p61, %p62
      %p64 = scmp.ne.s32.totalorder %s52, %s53
      %p65 = scmp.eq.s32.totalorder %s22, 1
      %p66 = por %p64, %p65
      %p68 = scmp.ne.s32.totalorder %s53, %s67
      %p69 = scmp.eq.s32.totalorder %s22, 0
      %p70 = por %p68, %p69
      %s72 = sadd.s32 %s71, 1
      %p75 = scmp.eq.s32.totalorder %s16, 1
      %p76 = scmp.ne.s32.totalorder %s71, %s73
      %p77 = scmp.eq.s32.totalorder %s16, 0
      %p78 = por %p76, %p77
      %p79 = scmp.ne.s32.totalorder %s71, %s73
      %p80 = scmp.eq.s32.totalorder %s21, 1
      %p81 = por %p79, %p80
      %p82 = scmp.ne.s32.totalorder %s73, %s74
      %p83 = scmp.eq.s32.totalorder %s21, 0
      %p84 = por %p82, %p83
      %p85 = scmp.ne.s32.totalorder %s73, %s74
      %p86 = scmp.eq.s32.totalorder %s22, 1
      %p87 = por %p85, %p86
      %p89 = scmp.ne.s32.totalorder %s74, %s88
      %p90 = scmp.eq.s32.totalorder %s22, 0
      %p91 = por %p89, %p90
      %s93 = sadd.s32 %s92, 1
      %p96 = scmp.eq.s32.totalorder %s16, 1
      %p97 = scmp.ne.s32.totalorder %s92, %s94
      %p98 = scmp.eq.s32.totalorder %s16, 0
      %p99 = por %p97, %p98
      %p100 = scmp.ne.s32.totalorder %s92, %s94
      %p101 = scmp.eq.s32.totalorder %s21, 1
      %p102 = por %p100, %p101
      %p103 = scmp.ne.s32.totalorder %s94, %s95
      %p104 = scmp.eq.s32.totalorder %s21, 0
      %p105 = por %p103, %p104
      %p106 = scmp.ne.s32.totalorder %s94, %s95
      %p107 = scmp.eq.s32.totalorder %s22, 1
      %p108 = por %p106, %p107
      %p110 = scmp.ne.s32.totalorder %s95, %s109
      %p111 = scmp.eq.s32.totalorder %s22, 0
      %p112 = por %p110, %p111
      %s114 = sadd.s32 %s113, 1
      %p117 = scmp.eq.s32.totalorder %s16, 1
      %p118 = scmp.ne.s32.totalorder %s113, %s115
      %p119 = scmp.eq.s32.totalorder %s16, 0
      %p120 = por %p118, %p119
      %p121 = scmp.ne.s32.totalorder %s113, %s115
      %p122 = scmp.eq.s32.totalorder %s21, 1
      %p123 = por %p121, %p122
      %p124 = scmp.ne.s32.totalorder %s115, %s116
      %p125 = scmp.eq.s32.totalorder %s21, 0
      %p126 = por %p124, %p125
      %p127 = scmp.ne.s32.totalorder %s115, %s116
      %p128 = scmp.eq.s32.totalorder %s22, 1
      %p129 = por %p127, %p128
      %p131 = scmp.ne.s32.totalorder %s116, %s130
      %p132 = scmp.eq.s32.totalorder %s22, 0
      %p133 = por %p131, %p132
      %s134 = ssub.s32 %s16, %s23
      %p135 = scmp.eq.s32.totalorder %s134, 0
      %s137 = sadd.s32 %s136, 1
      %s138 = scalar_select %p135, %s136, %s137
      %p141 = pneg %p135
      %p142 = scmp.eq.s32.totalorder %s16, 1
      %p143 = por %p141, %p142
      %p144 = scmp.ne.s32.totalorder %s136, %s139
      %p145 = scmp.eq.s32.totalorder %s16, 0
      %p146 = por %p144, %p145
      %p147 = scmp.ne.s32.totalorder %s136, %s139
      %p148 = scmp.eq.s32.totalorder %s21, 1
      %p149 = por %p147, %p148
      %p150 = scmp.ne.s32.totalorder %s139, %s140
      %p151 = scmp.eq.s32.totalorder %s21, 0
      %p152 = por %p150, %p151
      %p153 = scmp.ne.s32.totalorder %s139, %s140
      %p154 = scmp.eq.s32.totalorder %s22, 1
      %p155 = por %p153, %p154
      %p157 = scmp.ne.s32.totalorder %s140, %s156
      %p158 = scmp.eq.s32.totalorder %s22, 0
      %p159 = por %p157, %p158
      %p160 = scmp.le.s32.totalorder 1, %s16
      %p161 = scmp.lt.s32.totalorder %s16, 3
      %p162 = pnand %p160, %p161
      %p163 = pneg %p162
      // Predicated region
      $region9: #{actor_critic_forward.1} parent=5 // pred_check
        _
      $region10: #{actor_critic_forward.1} parent=5 // pred_check_branch
        %165 = sbr.rel (%p162) target = $region12
      $region11: #{actor_critic_forward.1} parent=5 // pred_region
        %s166 = ssub.s32 %s16, 1
        // Predicated region
        $region13: #{actor_critic_forward.1} parent=11 // pred_check
          %p167 = pneg %p63
        $region14: #{actor_critic_forward.1} parent=11 // pred_check_branch
          %169 = sbr.rel (%p167) target = $region16
        $region15: #{actor_critic_forward.1} parent=11 // pred_region
          %s171 = ssub.s32 512, 512
          %172 = vsyncadd [#allocation5], %s171
          %s173 = sshll.u32 [#allocation4], 4
          %s174 = int_to_ptr.vmem [resolvable:$true] %s173
          %179 = dma.hbm_to_vmem [thread:$0]  %s1, 512, %s174, [#allocation5], 128, 128, 8
        $region16: #{actor_critic_forward.1} parent=11 // pred_fallthru
          _
        // Predicated region
        $region17: #{actor_critic_forward.1} parent=11 // pred_check
          %p180 = pneg %p84
        $region18: #{actor_critic_forward.1} parent=11 // pred_check_branch
          %182 = sbr.rel (%p180) target = $region20
        $region19: #{actor_critic_forward.1} parent=11 // pred_region
          %s184 = ssub.s32 2048, 2048
          %185 = vsyncadd [#allocation5], %s184
          %s186 = sshll.u32 [#allocation6], 4
          %s187 = int_to_ptr.vmem [resolvable:$true] %s186
          %192 = dma.hbm_to_vmem [thread:$0]  %s2, 2048, %s187, [#allocation5], 128, 128, 8
        $region20: #{actor_critic_forward.1} parent=11 // pred_fallthru
          _
        // Predicated region
        $region21: #{actor_critic_forward.1} parent=11 // pred_check
          %p193 = pneg %p105
        $region22: #{actor_critic_forward.1} parent=11 // pred_check_branch
          %195 = sbr.rel (%p193) target = $region24
        $region23: #{actor_critic_forward.1} parent=11 // pred_region
          %s197 = ssub.s32 2048, 2048
          %198 = vsyncadd [#allocation8], %s197
          %s199 = sshll.u32 [#allocation7], 4
          %s200 = int_to_ptr.vmem [resolvable:$true] %s199
          %205 = dma.hbm_to_vmem [thread:$0]  %s3, 2048, %s200, [#allocation8], 128, 128, 8
        $region24: #{actor_critic_forward.1} parent=11 // pred_fallthru
          _
        // Predicated region
        $region25: #{actor_critic_forward.1} parent=11 // pred_check
          %p206 = pneg %p126
        $region26: #{actor_critic_forward.1} parent=11 // pred_check_branch
          %208 = sbr.rel (%p206) target = $region28
        $region27: #{actor_critic_forward.1} parent=11 // pred_region
          _
        $region28: #{actor_critic_forward.1} parent=11 // pred_fallthru
          _
      $region12: #{actor_critic_forward.1} parent=5 // pred_fallthru
        _
      %p209 = scmp.lt.s32.totalorder %s16, 2
      // Predicated region
      $region29: #{actor_critic_forward.1} parent=5 // pred_check
        %p210 = pneg %p209
      $region30: #{actor_critic_forward.1} parent=5 // pred_check_branch
        %212 = sbr.rel (%p210) target = $region32
      $region31: #{actor_critic_forward.1} parent=5 // pred_region
        // Predicated region
        $region33: #{actor_critic_forward.1} parent=31 // pred_check
          %p213 = pneg %p36
        $region34: #{actor_critic_forward.1} parent=31 // pred_check_branch
          %215 = sbr.rel (%p213) target = $region36
        $region35: #{actor_critic_forward.1} parent=31 // pred_region
          %s216 = sand.u32 %s26, 1
          %s217 = scalar_lea.sflag [#allocation3], %s216
          %s218 = sand.u32 %s26, 1
          %s219 = smul.addr %s218, 16
          %s220 = scalar_lea.vmem [#allocation2], %s219
          %s221 = smul.u32 2, %s16
          %s222 = ssub.s32 3, %s221
          %p223 = scmp.lt.s32.totalorder %s222, 2
          %s224 = scalar_select %p223, %s222, 2
          %s225 = smul.u32 128, %s224
          %s227 = ssub.s32 256, %s225
          %228 = vsyncadd %s217, %s227
          %p229 = scmp.ne.s32.totalorder 0, %s225
          %s230 = smul.addr %s221, 128
          %s231 = scalar_lea.hbm %s0, %s230
          %s232 = smul.u32 8, %s224
          %s233 = sshll.u32 %s220, 4
          %s234 = int_to_ptr.vmem [resolvable:$true] %s233
          %s235 = sshll.u32 %s232, 4
          %239 = dma.hbm_to_vmem [thread:$0]  (%p229), %s231, %s235, %s234, %s217, 128, 128, 8
        $region36: #{actor_critic_forward.1} parent=31 // pred_fallthru
          _
      $region32: #{actor_critic_forward.1} parent=5 // pred_fallthru
        _
      %p240 = scmp.le.s32.totalorder 1, %s16
      %p241 = scmp.lt.s32.totalorder %s16, 3
      %p242 = pnand %p240, %p241
      %p243 = pneg %p242
      // Predicated region
      $region37: #{actor_critic_forward.1} parent=5 // pred_check
        _
      $region38: #{actor_critic_forward.1} parent=5 // pred_check_branch
        %245 = sbr.rel (%p242) target = $region40
      $region39: #{actor_critic_forward.1} parent=5 // pred_region
        %s246 = ssub.s32 %s16, 1
        %s247 = sand.u32 %s29, 1
        %s248 = scalar_lea.sflag [#allocation3], %s247
        %s249 = sand.u32 %s29, 1
        %s250 = smul.addr %s249, 16
        %s251 = scalar_lea.vmem [#allocation2], %s250
        // Predicated region
        $region41: #{actor_critic_forward.1} parent=39 // pred_check
          %p252 = pneg %p42
        $region42: #{actor_critic_forward.1} parent=39 // pred_check_branch
          %254 = sbr.rel (%p252) target = $region44
        $region43: #{actor_critic_forward.1} parent=39 // pred_region
          %255 = dma.done %s248, 256
        $region44: #{actor_critic_forward.1} parent=39 // pred_fallthru
          _
        // Predicated region
        $region45: #{actor_critic_forward.1} parent=39 // pred_check
          %p256 = pneg %p63
        $region46: #{actor_critic_forward.1} parent=39 // pred_check_branch
          %258 = sbr.rel (%p256) target = $region48
        $region47: #{actor_critic_forward.1} parent=39 // pred_region
          %259 = dma.done [#allocation5], 512
        $region48: #{actor_critic_forward.1} parent=39 // pred_fallthru
          _
        // Predicated region
        $region49: #{actor_critic_forward.1} parent=39 // pred_check
          %p260 = pneg %p84
        $region50: #{actor_critic_forward.1} parent=39 // pred_check_branch
          %262 = sbr.rel (%p260) target = $region52
        $region51: #{actor_critic_forward.1} parent=39 // pred_region
          %263 = dma.done [#allocation5], 2048
        $region52: #{actor_critic_forward.1} parent=39 // pred_fallthru
          _
        // Predicated region
        $region53: #{actor_critic_forward.1} parent=39 // pred_check
          %p264 = pneg %p105
        $region54: #{actor_critic_forward.1} parent=39 // pred_check_branch
          %266 = sbr.rel (%p264) target = $region56
        $region55: #{actor_critic_forward.1} parent=39 // pred_region
          %267 = dma.done [#allocation8], 2048
        $region56: #{actor_critic_forward.1} parent=39 // pred_fallthru
          _
        %s268 = sand.u32 %s29, 1
        %s269 = scalar_lea.sflag [#allocation3], %s268
        %s270 = sand.u32 %s29, 1
        %s271 = smul.addr %s270, 16
        %s272 = scalar_lea.vmem [#allocation2], %s271
        %p273 = pneg %p42
        %p274 = pneg %p39
        %p275 = pneg %p63
        %p276 = pneg %p60
        %p277 = pneg %p84
        %p278 = pneg %p81
        %p279 = pneg %p105
        %p280 = pneg %p102
        %p281 = pneg %p126
        %p282 = pneg %p123
        %p283 = pneg %p152
        %p284 = pneg %p149
        %s285 = sand.u32 %s139, 1
        %s286 = sand.u32 %s139, 1
        %s287 = smul.addr %s286, 16
        %s288 = scalar_lea.vmem [#allocation9], %s287
        %s289 = smul.u32 2, %s21
        %s290 = ssub.s32 3, %s289
        %p291 = scmp.lt.s32.totalorder %s290, 2
        %s292 = scalar_select %p291, %s290, 2
        %s293 = smul.u32 128, %s292
        %s294 = smul.u32 2, %s21
        %s295 = ssub.s32 3, %s294
        %p296 = scmp.lt.s32.totalorder %s295, 2
        %s297 = scalar_select %p296, %s295, 2
        %s298 = smul.u32 128, %s297
        %v299 = vld [vmem:[%s251] sm:$0xff]
        %v300 = vld [vmem:[%s251 + $0x8] sm:$0xff]
        %v301 = vld [vmem:[%s4] sm:$0x7]
        %v302 = vld [vmem:[#allocation4] sm:$0xff]
        %v303 = vld [vmem:[#allocation4 + $0x8] sm:$0xff]
        %v304 = vld [vmem:[#allocation4 + $0x10] sm:$0xff]
        %v305 = vld [vmem:[#allocation4 + $0x18] sm:$0xff]
        %v306 = vlaneseq
        %v307 = vshrl.u32 %v306, 7
        %v308 = vsub.s32 0, %v307
        %v309 = vrot.slane %v301, %v308
        %vm310 = vcmask 261120
        %v312 = vsel %vm310, %v299, 0
        %v315 = vsel %vm310, %v300, 0
        %317 = vmatprep.subr.mxu0 0.0
        %318 = vmatpush1.msra.mxu0 0.0
        %319 = vmatprep.subr.mxu0 0.0
        %320 = vmatpush1.msra.mxu0 0.0
        %321 = vmatprep.subr.mxu0 0.0
        %322 = vmatpush1.msra.mxu0 0.0
        %323 = vmatprep.subr.mxu0 0.0
        %324 = vmatpush1.msra.mxu0 0.0
        %325 = vmatprep.subr.mxu0 0.0
        %326 = vmatpush1.msra.mxu0 0.0
        %327 = vmatprep.subr.mxu0 0.0
        %328 = vmatpush1.msra.mxu0 0.0
        %329 = vmatprep.subr.mxu0 0.0
        %330 = vmatpush1.msra.mxu0 0.0
        %331 = vmatprep.subr.mxu0 0.0
        %332 = vmatpush1.msra.mxu0 0.0
        %333 = vmatprep.subr.mxu0 0.0
        %334 = vmatpush1.msra.mxu0 0.0
        %335 = vmatprep.subr.mxu0 0.0
        %336 = vmatpush1.msra.mxu0 0.0
        %337 = vmatprep.subr.mxu0 0.0
        %338 = vmatpush1.msra.mxu0 0.0
        %339 = vmatprep.subr.mxu0 0.0
        %340 = vmatpush1.msra.mxu0 0.0
        %341 = vmatprep.subr.mxu0 0.0
        %342 = vmatpush1.msra.mxu0 %v305
        %343 = vmatprep.subr.mxu0 0.0
        %344 = vmatpush1.msra.mxu0 %v304
        %345 = vmatprep.subr.mxu0 0.0
        %346 = vmatpush1.msra.mxu0 %v303
        %347 = vmatprep.subr.mxu0 0.0
        %348 = vmatpush1.msra.mxu0 %v302
        %349 = vmatprep.subr.mxu0 0.0
        %350 = vmatpush2.msra.mxu0 0.0
        %351 = vmatprep.subr.mxu0 0.0
        %352 = vmatpush2.msra.mxu0 0.0
        %353 = vmatprep.subr.mxu0 0.0
        %354 = vmatpush2.msra.mxu0 0.0
        %355 = vmatprep.subr.mxu0 0.0
        %356 = vmatpush2.msra.mxu0 0.0
        %357 = vmatprep.subr.mxu0 0.0
        %358 = vmatpush2.msra.mxu0 0.0
        %359 = vmatprep.subr.mxu0 0.0
        %360 = vmatpush2.msra.mxu0 0.0
        %361 = vmatprep.subr.mxu0 0.0
        %362 = vmatpush2.msra.mxu0 0.0
        %363 = vmatprep.subr.mxu0 0.0
        %364 = vmatpush2.msra.mxu0 0.0
        %365 = vmatprep.subr.mxu0 0.0
        %366 = vmatpush2.msra.mxu0 0.0
        %367 = vmatprep.subr.mxu0 0.0
        %368 = vmatpush2.msra.mxu0 0.0
        %369 = vmatprep.subr.mxu0 0.0
        %370 = vmatpush2.msra.mxu0 0.0
        %371 = vmatprep.subr.mxu0 0.0
        %372 = vmatpush2.msra.mxu0 0.0
        %373 = vmatprep.subr.mxu0 0.0
        %374 = vmatpush2.msra.mxu0 0.0
        %375 = vmatprep.subr.mxu0 0.0
        %376 = vmatpush2.msra.mxu0 0.0
        %377 = vmatprep.subr.mxu0 0.0
        %378 = vmatpush2.msra.mxu0 0.0
        %379 = vmatprep.subr.mxu0 0.0
        %380 = vmatpush2.msra.mxu0 0.0
        %381 = vmatprep.mubr.f32.mxu0 0.0
        %382 = vmatmul.mubr.f32.gmra.mxu0 %v312
        %v383 = vpop.f32.mrf.mxu0
        %v384 = vadd.f32 %v309, %v383
        %v385 = vpop.f32.mrf.mxu0
        %386 = vmatprep.mubr.f32.mxu0 0.0
        %387 = vmatmul.mubr.f32.gmra.mxu0 %v315
        %v388 = vpop.f32.mrf.mxu0
        %v389 = vadd.f32 %v309, %v388
        %v390 = vpop.f32.mrf.mxu0
        %391 = vdwg.mxu0
        %v392 = vtanh.pop %v384
        %v393 = vtanh.pop %v389
        %v394 = vld [vmem:[#allocation6] sm:$0xff]
        %v395 = vld [vmem:[#allocation6 + $0x8] sm:$0xff]
        %v396 = vld [vmem:[#allocation6 + $0x10] sm:$0xff]
        %v397 = vld [vmem:[#allocation6 + $0x18] sm:$0xff]
        %v398 = vld [vmem:[#allocation6 + $0x20] sm:$0xff]
        %v399 = vld [vmem:[#allocation6 + $0x28] sm:$0xff]
        %v400 = vld [vmem:[#allocation6 + $0x30] sm:$0xff]
        %v401 = vld [vmem:[#allocation6 + $0x38] sm:$0xff]
        %v402 = vld [vmem:[#allocation6 + $0x40] sm:$0xff]
        %v403 = vld [vmem:[#allocation6 + $0x48] sm:$0xff]
        %v404 = vld [vmem:[#allocation6 + $0x50] sm:$0xff]
        %v405 = vld [vmem:[#allocation6 + $0x58] sm:$0xff]
        %v406 = vld [vmem:[#allocation6 + $0x60] sm:$0xff]
        %v407 = vld [vmem:[#allocation6 + $0x68] sm:$0xff]
        %v408 = vld [vmem:[#allocation6 + $0x70] sm:$0xff]
        %v409 = vld [vmem:[#allocation6 + $0x78] sm:$0xff]
        %v410 = vlaneseq
        %v411 = vshrl.u32 %v410, 7
        %v412 = vsub.s32 1, %v411
        %v413 = vrot.slane %v301, %v412
        %414 = vmatprep.subr.mxu0 0.0
        %415 = vmatpush1.msra.mxu0 %v409
        %416 = vmatprep.subr.mxu0 0.0
        %417 = vmatpush1.msra.mxu0 %v408
        %418 = vmatprep.subr.mxu0 0.0
        %419 = vmatpush1.msra.mxu0 %v407
        %420 = vmatprep.subr.mxu0 0.0
        %421 = vmatpush1.msra.mxu0 %v406
        %422 = vmatprep.subr.mxu0 0.0
        %423 = vmatpush1.msra.mxu0 %v405
        %424 = vmatprep.subr.mxu0 0.0
        %425 = vmatpush1.msra.mxu0 %v404
        %426 = vmatprep.subr.mxu0 0.0
        %427 = vmatpush1.msra.mxu0 %v403
        %428 = vmatprep.subr.mxu0 0.0
        %429 = vmatpush1.msra.mxu0 %v402
        %430 = vmatprep.subr.mxu0 0.0
        %431 = vmatpush1.msra.mxu0 %v401
        %432 = vmatprep.subr.mxu0 0.0
        %433 = vmatpush1.msra.mxu0 %v400
        %434 = vmatprep.subr.mxu0 0.0
        %435 = vmatpush1.msra.mxu0 %v399
        %436 = vmatprep.subr.mxu0 0.0
        %437 = vmatpush1.msra.mxu0 %v398
        %438 = vmatprep.subr.mxu0 0.0
        %439 = vmatpush1.msra.mxu0 %v397
        %440 = vmatprep.subr.mxu0 0.0
        %441 = vmatpush1.msra.mxu0 %v396
        %442 = vmatprep.subr.mxu0 0.0
        %443 = vmatpush1.msra.mxu0 %v395
        %444 = vmatprep.subr.mxu0 0.0
        %445 = vmatpush1.msra.mxu0 %v394
        %446 = vmatprep.subr.mxu0 0.0
        %447 = vmatpush2.msra.mxu0 0.0
        %448 = vmatprep.subr.mxu0 0.0
        %449 = vmatpush2.msra.mxu0 0.0
        %450 = vmatprep.subr.mxu0 0.0
        %451 = vmatpush2.msra.mxu0 0.0
        %452 = vmatprep.subr.mxu0 0.0
        %453 = vmatpush2.msra.mxu0 0.0
        %454 = vmatprep.subr.mxu0 0.0
        %455 = vmatpush2.msra.mxu0 0.0
        %456 = vmatprep.subr.mxu0 0.0
        %457 = vmatpush2.msra.mxu0 0.0
        %458 = vmatprep.subr.mxu0 0.0
        %459 = vmatpush2.msra.mxu0 0.0
        %460 = vmatprep.subr.mxu0 0.0
        %461 = vmatpush2.msra.mxu0 0.0
        %462 = vmatprep.subr.mxu0 0.0
        %463 = vmatpush2.msra.mxu0 0.0
        %464 = vmatprep.subr.mxu0 0.0
        %465 = vmatpush2.msra.mxu0 0.0
        %466 = vmatprep.subr.mxu0 0.0
        %467 = vmatpush2.msra.mxu0 0.0
        %468 = vmatprep.subr.mxu0 0.0
        %469 = vmatpush2.msra.mxu0 0.0
        %470 = vmatprep.subr.mxu0 0.0
        %471 = vmatpush2.msra.mxu0 0.0
        %472 = vmatprep.subr.mxu0 0.0
        %473 = vmatpush2.msra.mxu0 0.0
        %474 = vmatprep.subr.mxu0 0.0
        %475 = vmatpush2.msra.mxu0 0.0
        %476 = vmatprep.subr.mxu0 0.0
        %477 = vmatpush2.msra.mxu0 0.0
        %478 = vmatprep.mubr.f32.mxu0 0.0
        %479 = vmatmul.mubr.f32.gmra.mxu0 %v392
        %v480 = vpop.f32.mrf.mxu0
        %v481 = vadd.f32 %v413, %v480
        %v482 = vpop.f32.mrf.mxu0
        %483 = vmatprep.mubr.f32.mxu0 0.0
        %484 = vmatmul.mubr.f32.gmra.mxu0 %v393
        %v485 = vpop.f32.mrf.mxu0
        %v486 = vadd.f32 %v413, %v485
        %v487 = vpop.f32.mrf.mxu0
        %488 = vdwg.mxu0
        %v489 = vtanh.pop %v481
        %v490 = vtanh.pop %v486
        %v491 = vld [vmem:[#allocation7] sm:$0xff]
        %v492 = vld [vmem:[#allocation7 + $0x8] sm:$0xff]
        %v493 = vld [vmem:[#allocation7 + $0x10] sm:$0xff]
        %v494 = vld [vmem:[#allocation7 + $0x18] sm:$0xff]
        %v495 = vld [vmem:[#allocation7 + $0x20] sm:$0xff]
        %v496 = vld [vmem:[#allocation7 + $0x28] sm:$0xff]
        %v497 = vld [vmem:[#allocation7 + $0x30] sm:$0xff]
        %v498 = vld [vmem:[#allocation7 + $0x38] sm:$0xff]
        %v499 = vld [vmem:[#allocation7 + $0x40] sm:$0xff]
        %v500 = vld [vmem:[#allocation7 + $0x48] sm:$0xff]
        %v501 = vld [vmem:[#allocation7 + $0x50] sm:$0xff]
        %v502 = vld [vmem:[#allocation7 + $0x58] sm:$0xff]
        %v503 = vld [vmem:[#allocation7 + $0x60] sm:$0xff]
        %v504 = vld [vmem:[#allocation7 + $0x68] sm:$0xff]
        %v505 = vld [vmem:[#allocation7 + $0x70] sm:$0xff]
        %v506 = vld [vmem:[#allocation7 + $0x78] sm:$0xff]
        %v507 = vlaneseq
        %v508 = vshrl.u32 %v507, 7
        %v509 = vsub.s32 2, %v508
        %v510 = vrot.slane %v301, %v509
        %511 = vmatprep.subr.mxu0 0.0
        %512 = vmatpush1.msra.mxu0 %v506
        %513 = vmatprep.subr.mxu0 0.0
        %514 = vmatpush1.msra.mxu0 %v505
        %515 = vmatprep.subr.mxu0 0.0
        %516 = vmatpush1.msra.mxu0 %v504
        %517 = vmatprep.subr.mxu0 0.0
        %518 = vmatpush1.msra.mxu0 %v503
        %519 = vmatprep.subr.mxu0 0.0
        %520 = vmatpush1.msra.mxu0 %v502
        %521 = vmatprep.subr.mxu0 0.0
        %522 = vmatpush1.msra.mxu0 %v501
        %523 = vmatprep.subr.mxu0 0.0
        %524 = vmatpush1.msra.mxu0 %v500
        %525 = vmatprep.subr.mxu0 0.0
        %526 = vmatpush1.msra.mxu0 %v499
        %527 = vmatprep.subr.mxu0 0.0
        %528 = vmatpush1.msra.mxu0 %v498
        %529 = vmatprep.subr.mxu0 0.0
        %530 = vmatpush1.msra.mxu0 %v497
        %531 = vmatprep.subr.mxu0 0.0
        %532 = vmatpush1.msra.mxu0 %v496
        %533 = vmatprep.subr.mxu0 0.0
        %534 = vmatpush1.msra.mxu0 %v495
        %535 = vmatprep.subr.mxu0 0.0
        %536 = vmatpush1.msra.mxu0 %v494
        %537 = vmatprep.subr.mxu0 0.0
        %538 = vmatpush1.msra.mxu0 %v493
        %539 = vmatprep.subr.mxu0 0.0
        %540 = vmatpush1.msra.mxu0 %v492
        %541 = vmatprep.subr.mxu0 0.0
        %542 = vmatpush1.msra.mxu0 %v491
        %543 = vmatprep.subr.mxu0 0.0
        %544 = vmatpush2.msra.mxu0 0.0
        %545 = vmatprep.subr.mxu0 0.0
        %546 = vmatpush2.msra.mxu0 0.0
        %547 = vmatprep.subr.mxu0 0.0
        %548 = vmatpush2.msra.mxu0 0.0
        %549 = vmatprep.subr.mxu0 0.0
        %550 = vmatpush2.msra.mxu0 0.0
        %551 = vmatprep.subr.mxu0 0.0
        %552 = vmatpush2.msra.mxu0 0.0
        %553 = vmatprep.subr.mxu0 0.0
        %554 = vmatpush2.msra.mxu0 0.0
        %555 = vmatprep.subr.mxu0 0.0
        %556 = vmatpush2.msra.mxu0 0.0
        %557 = vmatprep.subr.mxu0 0.0
        %558 = vmatpush2.msra.mxu0 0.0
        %559 = vmatprep.subr.mxu0 0.0
        %560 = vmatpush2.msra.mxu0 0.0
        %561 = vmatprep.subr.mxu0 0.0
        %562 = vmatpush2.msra.mxu0 0.0
        %563 = vmatprep.subr.mxu0 0.0
        %564 = vmatpush2.msra.mxu0 0.0
        %565 = vmatprep.subr.mxu0 0.0
        %566 = vmatpush2.msra.mxu0 0.0
        %567 = vmatprep.subr.mxu0 0.0
        %568 = vmatpush2.msra.mxu0 0.0
        %569 = vmatprep.subr.mxu0 0.0
        %570 = vmatpush2.msra.mxu0 0.0
        %571 = vmatprep.subr.mxu0 0.0
        %572 = vmatpush2.msra.mxu0 0.0
        %573 = vmatprep.subr.mxu0 0.0
        %574 = vmatpush2.msra.mxu0 0.0
        %575 = vmatprep.mubr.f32.mxu0 0.0
        %576 = vmatmul.mubr.f32.gmra.mxu0 %v489
        %v577 = vpop.f32.mrf.mxu0
        %v578 = vadd.f32 %v510, %v577
        %v579 = vpop.f32.mrf.mxu0
        %580 = vmatprep.mubr.f32.mxu0 0.0
        %581 = vmatmul.mubr.f32.gmra.mxu0 %v490
        %v582 = vpop.f32.mrf.mxu0
        %v583 = vadd.f32 %v510, %v582
        %v584 = vpop.f32.mrf.mxu0
        %585 = vdwg.mxu0
        %586 = vst [vmem:[%s288] sm:$0xff] %v578
        %587 = vst [vmem:[%s288 + $0x8] sm:$0xff] %v583
        %s588 = sand.u32 %s139, 1
        %s589 = sand.u32 %s139, 1
        %s590 = smul.addr %s589, 16
        %s591 = scalar_lea.vmem [#allocation9], %s590
        // Predicated region
        $region57: #{actor_critic_forward.1} parent=39 // pred_check
          %p592 = pneg %p149
        $region58: #{actor_critic_forward.1} parent=39 // pred_check_branch
          %594 = sbr.rel (%p592) target = $region60
        $region59: #{actor_critic_forward.1} parent=39 // pred_region
          %s595 = smul.u32 2, %s21
          %s596 = ssub.s32 3, %s595
          %p597 = scmp.lt.s32.totalorder %s596, 2
          %s598 = scalar_select %p597, %s596, 2
          %s599 = smul.u32 128, %s598
          %p600 = scmp.ne.s32.totalorder 0, %s599
          %s601 = smul.addr %s595, 8
          %s602 = scalar_lea.vmem %s5, %s601
          // Predicated region
          $region61: #{actor_critic_forward.1} parent=59 // pred_check
            %p603 = pneg %p600
          $region62: #{actor_critic_forward.1} parent=59 // pred_check_branch
            %605 = sbr.rel (%p603) target = $region64
          $region63: #{actor_critic_forward.1} parent=59 // pred_region
            // Predicated region
            $region65: #{actor_critic_forward.1} parent=63 // pred_check
              _
            $region66: #{actor_critic_forward.1} parent=63 // pred_check_branch
              %607 = sbr.rel (0) target = $region68
            $region67: #{actor_critic_forward.1} parent=63 // pred_region
              // Predicated region
              $region87: #{actor_critic_forward.1} parent=67 // pred_check
                _
              $region88: #{actor_critic_forward.1} parent=67 // pred_check_branch
                %659 = sbr.rel (0) target = $region90
              $region89: #{actor_critic_forward.1} parent=67 // pred_region
                %s660 = sshrl.u32 %s598, 1
                // While loop
                $region91: #{actor_critic_forward.1} parent=89 // loop_pre_header
                  _
                $region92: #{actor_critic_forward.1} parent=89 // loop_header
                  %s662 = sphi 0, %s664
                  %p663 = scmp.ge.s32.totalorder %s662, %s660
                  %s667 = sphi 0, %s676
                  %s668 = sphi %s591, %s679
                  %s669 = sphi %s602, %s680
                $region93: #{actor_critic_forward.1} parent=89 // loop_header_branch
                  %666 = sbr.rel (%p663) target = $region97
                $region94: #{actor_critic_forward.1} parent=89 // loop_body
                  %v670 = vld [vmem:[%s668] sm:$0xff]
                  %671 = vst [vmem:[%s669] sm:$0xff] %v670
                  %v672 = vld [vmem:[%s668 + $0x8] sm:$0xff]
                  %673 = vst [vmem:[%s669 + $0x8] sm:$0xff] %v672
                  %s674 = sadd.s32 1, %s667
                  %p675 = scmp.ge.s32.totalorder %s674, %s660
                  %s676 = scalar_select %p675, 0, %s674
                  %s677 = smul.u32 %s676, 16
                  %s678 = smul.u32 %s676, 16
                  %s679 = scalar_lea.vmem %s591, %s677 [#allocation9]
                  %s680 = scalar_lea.vmem %s602, %s678
                $region95: #{actor_critic_forward.1} parent=89 // loop_footer
                  %s664 = sadd.s32 %s662, 1
                $region96: #{actor_critic_forward.1} parent=89 // loop_footer_branch
                  %661 = sbr.rel target = $region92
                $region97: #{actor_critic_forward.1} parent=89 // loop_exit
                  _
                %s681 = sshrl.u32 %s598, 1
                %s682 = sand.u32 %s598, 1
                %s683 = smul.u32 %s681, 2
                %s684 = smul.u32 8, %s683
                %s685 = scalar_lea.vmem %s591, %s684 [#allocation9]
                %s686 = smul.u32 8, %s683
                %s687 = scalar_lea.vmem %s602, %s686
                // While loop
                $region98: #{actor_critic_forward.1} parent=89 // loop_pre_header
                  _
                $region99: #{actor_critic_forward.1} parent=89 // loop_header
                  %s689 = sphi 0, %s691
                  %p690 = scmp.ge.s32.totalorder %s689, %s682
                  %s694 = sphi 0, %s701
                  %s695 = sphi %s685, %s704
                  %s696 = sphi %s687, %s705
                $region100: #{actor_critic_forward.1} parent=89 // loop_header_branch
                  %693 = sbr.rel (%p690) target = $region104
                $region101: #{actor_critic_forward.1} parent=89 // loop_body
                  %v697 = vld [vmem:[%s695] sm:$0xff]
                  %698 = vst [vmem:[%s696] sm:$0xff] %v697
                  %s699 = sadd.s32 1, %s694
                  %p700 = scmp.ge.s32.totalorder %s699, %s682
                  %s701 = scalar_select %p700, 0, %s699
                  %s702 = smul.u32 %s701, 8
                  %s703 = smul.u32 %s701, 8
                  %s704 = scalar_lea.vmem %s685, %s702 [#allocation9]
                  %s705 = scalar_lea.vmem %s687, %s703
                $region102: #{actor_critic_forward.1} parent=89 // loop_footer
                  %s691 = sadd.s32 %s689, 1
                $region103: #{actor_critic_forward.1} parent=89 // loop_footer_branch
                  %688 = sbr.rel target = $region99
                $region104: #{actor_critic_forward.1} parent=89 // loop_exit
                  _
              $region90: #{actor_critic_forward.1} parent=67 // pred_fallthru
                _
              // Predicated region
              $region105: #{actor_critic_forward.1} parent=67 // pred_check
                _
              $region106: #{actor_critic_forward.1} parent=67 // pred_check_branch
                %707 = sbr.rel target = $region108
              $region107: #{actor_critic_forward.1} parent=67 // pred_region
                _
              $region108: #{actor_critic_forward.1} parent=67 // pred_fallthru
                _
            $region68: #{actor_critic_forward.1} parent=63 // pred_fallthru
              _
            // Predicated region
            $region69: #{actor_critic_forward.1} parent=63 // pred_check
              _
            $region70: #{actor_critic_forward.1} parent=63 // pred_check_branch
              %609 = sbr.rel target = $region72
            $region71: #{actor_critic_forward.1} parent=63 // pred_region
              %s611 = ssub.s32 256, 1
              %s612 = sshrl.u32 %s598, 1
              // While loop
              $region73: #{actor_critic_forward.1} parent=71 // loop_pre_header
                _
              $region74: #{actor_critic_forward.1} parent=71 // loop_header
                %s614 = sphi 0, %s616
                %p615 = scmp.ge.s32.totalorder %s614, %s612
                %s619 = sphi 0, %s628
                %s620 = sphi %s591, %s631
                %s621 = sphi %s602, %s632
              $region75: #{actor_critic_forward.1} parent=71 // loop_header_branch
                %618 = sbr.rel (%p615) target = $region79
              $region76: #{actor_critic_forward.1} parent=71 // loop_body
                %v622 = vld [vmem:[%s620] sm:%s611]
                %623 = vst [vmem:[%s621] sm:%s611] %v622
                %v624 = vld [vmem:[%s620 + $0x8] sm:%s611]
                %625 = vst [vmem:[%s621 + $0x8] sm:%s611] %v624
                %s626 = sadd.s32 1, %s619
                %p627 = scmp.ge.s32.totalorder %s626, %s612
                %s628 = scalar_select %p627, 0, %s626
                %s629 = smul.u32 %s628, 16
                %s630 = smul.u32 %s628, 16
                %s631 = scalar_lea.vmem %s591, %s629 [#allocation9]
                %s632 = scalar_lea.vmem %s602, %s630
              $region77: #{actor_critic_forward.1} parent=71 // loop_footer
                %s616 = sadd.s32 %s614, 1
              $region78: #{actor_critic_forward.1} parent=71 // loop_footer_branch
                %613 = sbr.rel target = $region74
              $region79: #{actor_critic_forward.1} parent=71 // loop_exit
                _
              %s633 = sshrl.u32 %s598, 1
              %s634 = sand.u32 %s598, 1
              %s635 = smul.u32 %s633, 2
              %s636 = smul.u32 8, %s635
              %s637 = scalar_lea.vmem %s591, %s636 [#allocation9]
              %s638 = smul.u32 8, %s635
              %s639 = scalar_lea.vmem %s602, %s638
              // While loop
              $region80: #{actor_critic_forward.1} parent=71 // loop_pre_header
                _
              $region81: #{actor_critic_forward.1} parent=71 // loop_header
                %s641 = sphi 0, %s643
                %p642 = scmp.ge.s32.totalorder %s641, %s634
                %s646 = sphi 0, %s653
                %s647 = sphi %s637, %s656
                %s648 = sphi %s639, %s657
              $region82: #{actor_critic_forward.1} parent=71 // loop_header_branch
                %645 = sbr.rel (%p642) target = $region86
              $region83: #{actor_critic_forward.1} parent=71 // loop_body
                %v649 = vld [vmem:[%s647] sm:%s611]
                %650 = vst [vmem:[%s648] sm:%s611] %v649
                %s651 = sadd.s32 1, %s646
                %p652 = scmp.ge.s32.totalorder %s651, %s634
                %s653 = scalar_select %p652, 0, %s651
                %s654 = smul.u32 %s653, 8
                %s655 = smul.u32 %s653, 8
                %s656 = scalar_lea.vmem %s637, %s654 [#allocation9]
                %s657 = scalar_lea.vmem %s639, %s655
              $region84: #{actor_critic_forward.1} parent=71 // loop_footer
                %s643 = sadd.s32 %s641, 1
              $region85: #{actor_critic_forward.1} parent=71 // loop_footer_branch
                %640 = sbr.rel target = $region81
              $region86: #{actor_critic_forward.1} parent=71 // loop_exit
                _
            $region72: #{actor_critic_forward.1} parent=63 // pred_fallthru
              _
          $region64: #{actor_critic_forward.1} parent=59 // pred_fallthru
            _
          %708 = vnop
        $region60: #{actor_critic_forward.1} parent=39 // pred_fallthru
          _
      $region40: #{actor_critic_forward.1} parent=5 // pred_fallthru
        _
      %p709 = scmp.le.s32.totalorder 2, %s16
      // Predicated region
      $region109: #{actor_critic_forward.1} parent=5 // pred_check
        %p710 = pneg %p709
      $region110: #{actor_critic_forward.1} parent=5 // pred_check_branch
        %712 = sbr.rel (%p710) target = $region112
      $region111: #{actor_critic_forward.1} parent=5 // pred_region
        %s713 = ssub.s32 %s16, 2
        // Predicated region
        $region113: #{actor_critic_forward.1} parent=111 // pred_check
          %p714 = pneg %p155
        $region114: #{actor_critic_forward.1} parent=111 // pred_check_branch
          %716 = sbr.rel (%p714) target = $region116
        $region115: #{actor_critic_forward.1} parent=111 // pred_region
          %s717 = sand.u32 %s140, 1
          %s718 = sand.u32 %s140, 1
          %s719 = smul.addr %s718, 16
          %s720 = scalar_lea.vmem [#allocation9], %s719
        $region116: #{actor_critic_forward.1} parent=111 // pred_fallthru
          _
      $region112: #{actor_critic_forward.1} parent=5 // pred_fallthru
        _
    $region6: #{actor_critic_forward.1} parent=1 // loop_footer
      %s20 = sadd.s32 1, %s16
    $region7: #{actor_critic_forward.1} parent=1 // loop_footer_branch
      %15 = sbr.rel target = $region3
    $region8: #{actor_critic_forward.1} parent=1 // loop_exit
      _
    %721 = vsyncpa [#allocation3], 1
    %s722 = scalar_lea.sflag [#allocation3], 1
    %723 = vsyncpa %s722, 1
    %724 = vsyncpa [#allocation5], 1
    %725 = vsyncpa [#allocation8], 1

</llo_original>
